<compile_context>
chip_gen: v6e
topology: v6e:2x2x1
jax: 0.10.0
libtpu: 0.0.40
codegen_flags: <defaults>
</compile_context>

<pallas_src>
import functools

import jax
import jax.numpy as jnp
from jax.experimental import pallas as pl
from jax.experimental.pallas import tpu as pltpu


def _linear_block_kernel(x_ref, w_ref, b_ref, gamma_ref, beta_ref, bits_ref, out_ref, *,
                         drop_threshold, keep_scale, negative_slope, eps, apply_dropout):
    # ---- fc: contract x (N, K) with w (TM, K) along K -> (N, TM) on the MXU ----
    y = jax.lax.dot_general(
        x_ref[...], w_ref[...],
        dimension_numbers=(((1,), (1,)), ((), ())),
        preferred_element_type=jnp.float32,
    )
    y = y + b_ref[...].astype(jnp.float32)

    # ---- LeakyReLU ----
    y = jnp.where(y >= 0.0, y, jnp.float32(negative_slope) * y)

    # ---- Dropout (inverted, training mode): one uint32 compare + one select ----
    # TODO(synk): torch's dropout RNG stream cannot be reproduced bit-exactly; the mask
    # is deterministic given `seed` via jax.random.bits generated in the wrapper.
    if apply_dropout:
        keep = bits_ref[...] >= jnp.uint32(drop_threshold)
        y = jnp.where(keep, y * jnp.float32(keep_scale), jnp.float32(0.0))

    # ---- BatchNorm1d (training mode): per-feature batch stats, biased variance ----
    mean = jnp.mean(y, axis=0, keepdims=True)
    mean_sq = jnp.mean(y * y, axis=0, keepdims=True)
    var = jnp.maximum(mean_sq - mean * mean, 0.0)
    s = gamma_ref[...].astype(jnp.float32) * jax.lax.rsqrt(var + jnp.float32(eps))
    t = beta_ref[...].astype(jnp.float32) - mean * s
    out_ref[...] = (y * s + t).astype(out_ref.dtype)
    # TODO(synk): nn.BatchNorm1d's running_mean/running_var updates (unbiased variance)
    # are not produced here; they do not affect the training-mode forward output.


def linear_block(x, weight, bias, gamma, beta, seed, *,
                 dropout_rate=0.1, negative_slope=0.01, eps=1e-5, training=True):
    """x: (N, n_input) f32.  weight: (n_output, n_input) as in nn.Linear (no transpose)."""
    n, k = x.shape
    m, k_w = weight.shape
    assert k_w == k

    # Pad feature axes to multiples of 128 lanes (lane-dense loads/stores).
    k_pad = int(pl.cdiv(k, 128) * 128)
    m_pad = int(pl.cdiv(m, 128) * 128)

    x_p = jnp.pad(x, ((0, 0), (0, k_pad - k)))
    w_p = jnp.pad(jnp.asarray(weight), ((0, m_pad - m), (0, k_pad - k)))
    b_p = jnp.pad(jnp.asarray(bias), (0, m_pad - m)).reshape(1, m_pad)
    g_p = jnp.pad(jnp.asarray(gamma), (0, m_pad - m)).reshape(1, m_pad)
    be_p = jnp.pad(jnp.asarray(beta), (0, m_pad - m)).reshape(1, m_pad)

    apply_dropout = bool(training) and float(dropout_rate) > 0.0
    if apply_dropout:
        bits = jax.random.bits(jax.random.PRNGKey(seed), (n, m_pad), dtype=jnp.uint32)
        drop_threshold = min(int(round(float(dropout_rate) * (2.0 ** 32))), 2 ** 32 - 1)
        keep_scale = 1.0 / (1.0 - float(dropout_rate))
    else:
        bits = jnp.zeros((n, m_pad), jnp.uint32)
        drop_threshold = 0
        keep_scale = 1.0

    # Feature-axis tile: largest multiple of 128 (<= 2048) that divides m_pad.
    tile_m = 128
    for cand in (2048, 1024, 512, 256, 128):
        if m_pad % cand == 0:
            tile_m = cand
            break

    kernel = functools.partial(
        _linear_block_kernel,
        drop_threshold=drop_threshold,
        keep_scale=keep_scale,
        negative_slope=float(negative_slope),
        eps=float(eps),
        apply_dropout=apply_dropout,
    )

    out_p = pl.pallas_call(
        kernel,
        out_shape=jax.ShapeDtypeStruct((n, m_pad), x.dtype),
        grid=(m_pad // tile_m,),
        in_specs=[
            pl.BlockSpec((n, k_pad), lambda j: (0, 0)),        # x: full batch, resident
            pl.BlockSpec((tile_m, k_pad), lambda j: (j, 0)),   # weight tile, native layout
            pl.BlockSpec((1, tile_m), lambda j: (0, j)),       # bias tile
            pl.BlockSpec((1, tile_m), lambda j: (0, j)),       # bn gamma tile
            pl.BlockSpec((1, tile_m), lambda j: (0, j)),       # bn beta tile
            pl.BlockSpec((n, tile_m), lambda j: (0, j)),       # dropout bits tile
        ],
        out_specs=pl.BlockSpec((n, tile_m), lambda j: (0, j)),
        compiler_params=pltpu.CompilerParams(
            dimension_semantics=("parallel",)),
    )(x_p, w_p, b_p, g_p, be_p, bits)

    return out_p[:, :m]


if __name__ == "__main__":
    # Small shapes consistent with the module: batch=8, n_input=32, n_output=64.
    n_batch, n_input, n_output = 8, 32, 64
    dropout_rate = 0.1

    key = jax.random.PRNGKey(0)
    kx, kw, kb = jax.random.split(key, 3)

    x = jax.random.normal(kx, (n_batch, n_input), dtype=jnp.float32)

    # Deterministic parameter init (shapes from nn.Linear / nn.BatchNorm1d __init__).
    bound = 1.0 / (n_input ** 0.5)
    weight = jax.random.uniform(kw, (n_output, n_input), jnp.float32, -bound, bound)
    bias = jax.random.uniform(kb, (n_output,), jnp.float32, -bound, bound)
    gamma = jnp.ones((n_output,), jnp.float32)   # BatchNorm affine weight init
    beta = jnp.zeros((n_output,), jnp.float32)   # BatchNorm affine bias init

    out = linear_block(x, weight, bias, gamma, beta, seed=0,
                       dropout_rate=dropout_rate)
    out = jax.block_until_ready(out)
    assert out.shape == (n_batch, n_output)
    assert bool(jnp.all(jnp.isfinite(out)))
    print("KERNEL_OK")
</pallas_src>

<mosaic_0001>
module attributes {stable_mosaic.version = 11 : i64} {
  func.func @_linear_block_kernel(%arg0: i32, %arg1: memref<8x128xf32, #tpu.memory_space<vmem>>, %arg2: memref<128x128xf32, #tpu.memory_space<vmem>>, %arg3: memref<1x128xf32, #tpu.memory_space<vmem>>, %arg4: memref<1x128xf32, #tpu.memory_space<vmem>>, %arg5: memref<1x128xf32, #tpu.memory_space<vmem>>, %arg6: memref<8x128xi32, #tpu.memory_space<vmem>>, %arg7: memref<8x128xf32, #tpu.memory_space<vmem>>) attributes {dimension_semantics = [#tpu.dimension_semantics<parallel>], iteration_bounds = array<i64: 1>, scalar_prefetch = 0 : i64, scratch_operands = 0 : i64, tpu.core_type = #tpu.core_type<tc>, window_params = [{pipeline_mode = #tpu.pipeline_mode<synchronous>, transform_indices = @transform_0, window_bounds = array<i64: 8, 128>}, {transform_indices = @transform_1, window_bounds = array<i64: 128, 128>}, {transform_indices = @transform_2, window_bounds = array<i64: 1, 128>}, {transform_indices = @transform_3, window_bounds = array<i64: 1, 128>}, {transform_indices = @transform_4, window_bounds = array<i64: 1, 128>}, {transform_indices = @transform_5, window_bounds = array<i64: 8, 128>}, {transform_indices = @transform_6, window_bounds = array<i64: 8, 128>}]} {
    %c0 = arith.constant 0 : index
    %c0_0 = arith.constant 0 : index
    %0 = vector.load %arg1[%c0, %c0_0] : memref<8x128xf32, #tpu.memory_space<vmem>>, vector<8x128xf32>
    %c0_1 = arith.constant 0 : index
    %c0_2 = arith.constant 0 : index
    %1 = vector.load %arg2[%c0_1, %c0_2] : memref<128x128xf32, #tpu.memory_space<vmem>>, vector<128x128xf32>
    %cst = arith.constant dense<0.000000e+00> : vector<8x128xf32>
    %2 = tpu.matmul %0, %1, %cst {dimension_numbers = #tpu.dot_dimension_numbers<[1], [1], [0], [0], [0, 0, 1, 0], [], []>} : vector<8x128xf32>, vector<128x128xf32>, vector<8x128xf32> -> vector<8x128xf32>
    %c0_3 = arith.constant 0 : index
    %c0_4 = arith.constant 0 : index
    %3 = vector.load %arg3[%c0_3, %c0_4] : memref<1x128xf32, #tpu.memory_space<vmem>>, vector<1x128xf32>
    %4 = vector.broadcast %3 : vector<1x128xf32> to vector<8x128xf32>
    %5 = arith.addf %2, %4 : vector<8x128xf32>
    %cst_5 = arith.constant 0.000000e+00 : f32
    %6 = vector.broadcast %cst_5 : f32 to vector<8x128xf32>
    %7 = arith.cmpf oge, %5, %6 : vector<8x128xf32>
    %cst_6 = arith.constant 0.00999999977 : f32
    %8 = vector.broadcast %cst_6 : f32 to vector<8x128xf32>
    %9 = arith.mulf %8, %5 : vector<8x128xf32>
    %10 = arith.select %7, %5, %9 : vector<8x128xi1>, vector<8x128xf32>
    %c0_7 = arith.constant 0 : index
    %c0_8 = arith.constant 0 : index
    %11 = vector.load %arg6[%c0_7, %c0_8] : memref<8x128xi32, #tpu.memory_space<vmem>>, vector<8x128xi32>
    %c429496730_i32 = arith.constant 429496730 : i32
    %12 = vector.broadcast %c429496730_i32 : i32 to vector<8x128xi32>
    %13 = arith.cmpi uge, %11, %12 : vector<8x128xi32>
    %cst_9 = arith.constant 1.11111116 : f32
    %14 = vector.broadcast %cst_9 : f32 to vector<8x128xf32>
    %15 = arith.mulf %10, %14 : vector<8x128xf32>
    %cst_10 = arith.constant 0.000000e+00 : f32
    %16 = vector.broadcast %cst_10 : f32 to vector<8x128xf32>
    %17 = arith.select %13, %15, %16 : vector<8x128xi1>, vector<8x128xf32>
    %cst_11 = arith.constant dense<0.000000e+00> : vector<128xf32>
    %18 = vector.multi_reduction <add>, %17, %cst_11 [0] : vector<8x128xf32> to vector<128xf32>
    %19 = vector.shape_cast %18 : vector<128xf32> to vector<1x128xf32>
    %cst_12 = arith.constant 8.000000e+00 : f32
    %20 = vector.broadcast %cst_12 : f32 to vector<1x128xf32>
    %21 = arith.divf %19, %20 : vector<1x128xf32>
    %22 = arith.mulf %17, %17 : vector<8x128xf32>
    %cst_13 = arith.constant dense<0.000000e+00> : vector<128xf32>
    %23 = vector.multi_reduction <add>, %22, %cst_13 [0] : vector<8x128xf32> to vector<128xf32>
    %24 = vector.shape_cast %23 : vector<128xf32> to vector<1x128xf32>
    %cst_14 = arith.constant 8.000000e+00 : f32
    %25 = vector.broadcast %cst_14 : f32 to vector<1x128xf32>
    %26 = arith.divf %24, %25 : vector<1x128xf32>
    %27 = arith.mulf %21, %21 : vector<1x128xf32>
    %28 = arith.subf %26, %27 : vector<1x128xf32>
    %cst_15 = arith.constant 0.000000e+00 : f32
    %29 = vector.broadcast %cst_15 : f32 to vector<1x128xf32>
    %30 = arith.maximumf %28, %29 : vector<1x128xf32>
    %c0_16 = arith.constant 0 : index
    %c0_17 = arith.constant 0 : index
    %31 = vector.load %arg4[%c0_16, %c0_17] : memref<1x128xf32, #tpu.memory_space<vmem>>, vector<1x128xf32>
    %cst_18 = arith.constant 9.99999974E-6 : f32
    %32 = vector.broadcast %cst_18 : f32 to vector<1x128xf32>
    %33 = arith.addf %30, %32 : vector<1x128xf32>
    %34 = math.rsqrt %33 : vector<1x128xf32>
    %35 = arith.mulf %31, %34 : vector<1x128xf32>
    %c0_19 = arith.constant 0 : index
    %c0_20 = arith.constant 0 : index
    %36 = vector.load %arg5[%c0_19, %c0_20] : memref<1x128xf32, #tpu.memory_space<vmem>>, vector<1x128xf32>
    %37 = arith.mulf %21, %35 : vector<1x128xf32>
    %38 = arith.subf %36, %37 : vector<1x128xf32>
    %39 = vector.broadcast %35 : vector<1x128xf32> to vector<8x128xf32>
    %40 = arith.mulf %17, %39 : vector<8x128xf32>
    %41 = vector.broadcast %38 : vector<1x128xf32> to vector<8x128xf32>
    %42 = arith.addf %40, %41 : vector<8x128xf32>
    %c0_21 = arith.constant 0 : index
    %c0_22 = arith.constant 0 : index
    %43 = vector.load %arg7[%c0_21, %c0_22] : memref<8x128xf32, #tpu.memory_space<vmem>>, vector<8x128xf32>
    tpu.vector_store %arg7[%c0_21, %c0_22], %42 {strides = array<i32>} : memref<8x128xf32, #tpu.memory_space<vmem>>, vector<8x128xf32>,
    return
  }
  func.func @transform_0(%arg0: i32) -> (i32, i32) {
    %c0_i32 = arith.constant 0 : i32
    %c0_i32_0 = arith.constant 0 : i32
    %c0_i32_1 = arith.constant 0 : i32
    return %c0_i32, %c0_i32_0 : i32, i32
  }
  func.func @transform_1(%arg0: i32) -> (i32, i32) {
    %c0_i32 = arith.constant 0 : i32
    %c0_i32_0 = arith.constant 0 : i32
    return %arg0, %c0_i32 : i32, i32
  }
  func.func @transform_2(%arg0: i32) -> (i32, i32) {
    %c0_i32 = arith.constant 0 : i32
    %c0_i32_0 = arith.constant 0 : i32
    return %c0_i32, %arg0 : i32, i32
  }
  func.func @transform_3(%arg0: i32) -> (i32, i32) {
    %c0_i32 = arith.constant 0 : i32
    %c0_i32_0 = arith.constant 0 : i32
    return %c0_i32, %arg0 : i32, i32
  }
  func.func @transform_4(%arg0: i32) -> (i32, i32) {
    %c0_i32 = arith.constant 0 : i32
    %c0_i32_0 = arith.constant 0 : i32
    return %c0_i32, %arg0 : i32, i32
  }
  func.func @transform_5(%arg0: i32) -> (i32, i32) {
    %c0_i32 = arith.constant 0 : i32
    %c0_i32_0 = arith.constant 0 : i32
    return %c0_i32, %arg0 : i32, i32
  }
  func.func @transform_6(%arg0: i32) -> (i32, i32) {
    %c0_i32 = arith.constant 0 : i32
    %c0_i32_0 = arith.constant 0 : i32
    return %c0_i32, %arg0 : i32, i32
  }
}

</mosaic_0001>

<llo_original>
// kernel: tpu_custom_call.1
$region0: #{tpu_custom_call.1}
  #allocation0 [shape = 'u32[]', space=smem, size = 0x4, offset = 0x4, fixed_abs, tag = 'smem constant byte address 0x4 - core index']
  #allocation1 [shape = 'u32[144,128]{1,0:T(1,128)}', space=vmem, size = 0x12000, scoped, tag = 'internal scratch']
  %s0 = inlined_call_operand.hbm [shape: f32[8,128], index: 0, kind: input, shape index: {}]
  %s1 = inlined_call_operand.hbm [shape: f32[128,128], index: 1, kind: input, shape index: {}]
  %s2 = inlined_call_operand.vmem [shape: f32[1,128], index: 2, kind: input, shape index: {}]
  %s3 = inlined_call_operand.hbm [shape: f32[1,128], index: 3, kind: input, shape index: {}]
  %s4 = inlined_call_operand.hbm [shape: f32[1,128], index: 4, kind: input, shape index: {}]
  %s5 = inlined_call_operand.vmem [shape: u32[8,128], index: 5, kind: input, shape index: {}]
  %s6 = inlined_call_operand.hbm [shape: f32[8,128], index: 6, kind: output, shape index: {}]
  %s7 = sld [smem:[#allocation0]]
  $region50: #{tpu_custom_call.1} parent=0
    _
  %s9 = ssub.s32 1, %s7
  %s10 = scalar_select 0, %s9, %s7
  $region1: #{tpu_custom_call.1} parent=0
    #allocation2 [shape = 'u8[4096]{0}', space=vmem, size = 0x1000, scoped, tag = 'input window, operand 0, single buffered']
    #allocation3 [shape = 's32[1]{0}', space=sflag, size = 0x4, scoped, tag = 'scoped memory for tpu_custom_call.1']
    #allocation4 [shape = 's32[1]{0}', space=sflag, size = 0x4, scoped, tag = 'scoped memory for tpu_custom_call.1']
    #allocation5 [shape = 'u8[65536]{0}', space=vmem, size = 0x10000, scoped, tag = 'input window, operand 1, single buffered']
    #allocation6 [shape = 's32[1]{0}', space=sflag, size = 0x4, scoped, tag = 'scoped memory for tpu_custom_call.1']
    #allocation7 [shape = 'u8[512]{0}', space=vmem, size = 0x400, scoped, tag = 'input window, operand 3, single buffered']
    #allocation8 [shape = 'u8[512]{0}', space=vmem, size = 0x400, scoped, tag = 'input window, operand 4, single buffered']
    #allocation9 [shape = 's32[1]{0}', space=sflag, size = 0x4, scoped, tag = 'scoped memory for tpu_custom_call.1']
    #allocation10 [shape = 'u8[4096]{0}', space=vmem, size = 0x1000, scoped, tag = 'output window, operand 0, single buffered']
    %11 = vsyncpa [#allocation3], 0
    %12 = vsyncpa [#allocation6], 0
    %13 = vsyncpa [#allocation9], 0
    %14 = vsyncpa [#allocation4], 0
    // Predicated region
    $region2: #{tpu_custom_call.1} parent=1 // pred_check
      _
    $region3: #{tpu_custom_call.1} parent=1 // pred_check_branch
      %16 = sbr.rel (0) target = $region5
    $region4: #{tpu_custom_call.1} parent=1 // pred_region
      %s18 = ssub.s32 128, 128
      %19 = vsyncadd [#allocation3], %s18
      %s21 = sshll.u32 [#allocation2], 4
      %s22 = int_to_ptr.vmem [resolvable:$true] %s21
      %24 = dma.hbm_to_vmem [thread:$0]  %s0, 128, %s22, [#allocation3]
    $region5: #{tpu_custom_call.1} parent=1 // pred_fallthru
      _
    // Predicated region
    $region6: #{tpu_custom_call.1} parent=1 // pred_check
      _
    $region7: #{tpu_custom_call.1} parent=1 // pred_check_branch
      %26 = sbr.rel (0) target = $region9
    $region8: #{tpu_custom_call.1} parent=1 // pred_region
      %s28 = ssub.s32 2048, 2048
      %29 = vsyncadd [#allocation6], %s28
      %s30 = sshll.u32 [#allocation5], 4
      %s31 = int_to_ptr.vmem [resolvable:$true] %s30
      %36 = dma.hbm_to_vmem [thread:$0]  %s1, 2048, %s31, [#allocation6], 128, 128, 8
    $region9: #{tpu_custom_call.1} parent=1 // pred_fallthru
      _
    // Predicated region
    $region10: #{tpu_custom_call.1} parent=1 // pred_check
      _
    $region11: #{tpu_custom_call.1} parent=1 // pred_check_branch
      %38 = sbr.rel (0) target = $region13
    $region12: #{tpu_custom_call.1} parent=1 // pred_region
      _
    $region13: #{tpu_custom_call.1} parent=1 // pred_fallthru
      _
    // Predicated region
    $region14: #{tpu_custom_call.1} parent=1 // pred_check
      _
    $region15: #{tpu_custom_call.1} parent=1 // pred_check_branch
      %40 = sbr.rel (0) target = $region17
    $region16: #{tpu_custom_call.1} parent=1 // pred_region
      %s42 = ssub.s32 16, 16
      %43 = vsyncadd [#allocation6], %s42
      %s45 = sshll.u32 [#allocation7], 4
      %s46 = int_to_ptr.vmem [resolvable:$true] %s45
      %48 = dma.hbm_to_vmem [thread:$0]  %s3, 16, %s46, [#allocation6]
    $region17: #{tpu_custom_call.1} parent=1 // pred_fallthru
      _
    // Predicated region
    $region18: #{tpu_custom_call.1} parent=1 // pred_check
      _
    $region19: #{tpu_custom_call.1} parent=1 // pred_check_branch
      %50 = sbr.rel (0) target = $region21
    $region20: #{tpu_custom_call.1} parent=1 // pred_region
      %s52 = ssub.s32 16, 16
      %53 = vsyncadd [#allocation9], %s52
      %s55 = sshll.u32 [#allocation8], 4
      %s56 = int_to_ptr.vmem [resolvable:$true] %s55
      %58 = dma.hbm_to_vmem [thread:$0]  %s4, 16, %s56, [#allocation9]
    $region21: #{tpu_custom_call.1} parent=1 // pred_fallthru
      _
    // Predicated region
    $region22: #{tpu_custom_call.1} parent=1 // pred_check
      _
    $region23: #{tpu_custom_call.1} parent=1 // pred_check_branch
      %60 = sbr.rel (0) target = $region25
    $region24: #{tpu_custom_call.1} parent=1 // pred_region
      _
    $region25: #{tpu_custom_call.1} parent=1 // pred_fallthru
      _
    // Predicated region
    $region26: #{tpu_custom_call.1} parent=1 // pred_check
      _
    $region27: #{tpu_custom_call.1} parent=1 // pred_check_branch
      %62 = sbr.rel (0) target = $region29
    $region28: #{tpu_custom_call.1} parent=1 // pred_region
      %63 = dma.done [#allocation3], 128
    $region29: #{tpu_custom_call.1} parent=1 // pred_fallthru
      _
    // Predicated region
    $region30: #{tpu_custom_call.1} parent=1 // pred_check
      _
    $region31: #{tpu_custom_call.1} parent=1 // pred_check_branch
      %65 = sbr.rel (0) target = $region33
    $region32: #{tpu_custom_call.1} parent=1 // pred_region
      %66 = dma.done [#allocation6], 2048
    $region33: #{tpu_custom_call.1} parent=1 // pred_fallthru
      _
    // Predicated region
    $region34: #{tpu_custom_call.1} parent=1 // pred_check
      _
    $region35: #{tpu_custom_call.1} parent=1 // pred_check_branch
      %68 = sbr.rel (0) target = $region37
    $region36: #{tpu_custom_call.1} parent=1 // pred_region
      %69 = dma.done [#allocation6], 16
    $region37: #{tpu_custom_call.1} parent=1 // pred_fallthru
      _
    // Predicated region
    $region38: #{tpu_custom_call.1} parent=1 // pred_check
      _
    $region39: #{tpu_custom_call.1} parent=1 // pred_check_branch
      %71 = sbr.rel (0) target = $region41
    $region40: #{tpu_custom_call.1} parent=1 // pred_region
      %72 = dma.done [#allocation9], 16
    $region41: #{tpu_custom_call.1} parent=1 // pred_fallthru
      _
    %v73 = vld [vmem:[#allocation2] sm:$0xff]
    %v74 = vld [vmem:[#allocation5] sm:$0xff]
    %v75 = vld [vmem:[#allocation5 + $0x8] sm:$0xff]
    %v76 = vld [vmem:[#allocation5 + $0x10] sm:$0xff]
    %v77 = vld [vmem:[#allocation5 + $0x18] sm:$0xff]
    %v78 = vld [vmem:[#allocation5 + $0x20] sm:$0xff]
    %v79 = vld [vmem:[#allocation5 + $0x28] sm:$0xff]
    %v80 = vld [vmem:[#allocation5 + $0x30] sm:$0xff]
    %v81 = vld [vmem:[#allocation5 + $0x38] sm:$0xff]
    %v82 = vld [vmem:[#allocation5 + $0x40] sm:$0xff]
    %v83 = vld [vmem:[#allocation5 + $0x48] sm:$0xff]
    %v84 = vld [vmem:[#allocation5 + $0x50] sm:$0xff]
    %v85 = vld [vmem:[#allocation5 + $0x58] sm:$0xff]
    %v86 = vld [vmem:[#allocation5 + $0x60] sm:$0xff]
    %v87 = vld [vmem:[#allocation5 + $0x68] sm:$0xff]
    %v88 = vld [vmem:[#allocation5 + $0x70] sm:$0xff]
    %v89 = vld [vmem:[#allocation5 + $0x78] sm:$0xff]
    %v90 = vld [vmem:[%s2] sm:$0x1]
    %v92 = vlaneseq
    %v93 = vshrl.u32 %v92, 7
    %v94 = vsub.s32 0, %v93
    %v95 = vrot.slane %v90, %v94
    %97 = vmatprep.subr.mxu0 0.0
    %98 = vmatpush1.xpose.msra.mxu0 %v89
    %99 = vmatprep.subr.mxu0 0.0
    %100 = vmatpush1.xpose.msra.mxu0 %v88
    %101 = vmatprep.subr.mxu0 0.0
    %102 = vmatpush1.xpose.msra.mxu0 %v87
    %103 = vmatprep.subr.mxu0 0.0
    %104 = vmatpush1.xpose.msra.mxu0 %v86
    %105 = vmatprep.subr.mxu0 0.0
    %106 = vmatpush1.xpose.msra.mxu0 %v85
    %107 = vmatprep.subr.mxu0 0.0
    %108 = vmatpush1.xpose.msra.mxu0 %v84
    %109 = vmatprep.subr.mxu0 0.0
    %110 = vmatpush1.xpose.msra.mxu0 %v83
    %111 = vmatprep.subr.mxu0 0.0
    %112 = vmatpush1.xpose.msra.mxu0 %v82
    %113 = vmatprep.subr.mxu0 0.0
    %114 = vmatpush1.xpose.msra.mxu0 %v81
    %115 = vmatprep.subr.mxu0 0.0
    %116 = vmatpush1.xpose.msra.mxu0 %v80
    %117 = vmatprep.subr.mxu0 0.0
    %118 = vmatpush1.xpose.msra.mxu0 %v79
    %119 = vmatprep.subr.mxu0 0.0
    %120 = vmatpush1.xpose.msra.mxu0 %v78
    %121 = vmatprep.subr.mxu0 0.0
    %122 = vmatpush1.xpose.msra.mxu0 %v77
    %123 = vmatprep.subr.mxu0 0.0
    %124 = vmatpush1.xpose.msra.mxu0 %v76
    %125 = vmatprep.subr.mxu0 0.0
    %126 = vmatpush1.xpose.msra.mxu0 %v75
    %127 = vmatprep.subr.mxu0 0.0
    %128 = vmatpush1.xpose.msra.mxu0 %v74
    %129 = vmatprep.subr.mxu0 0.0
    %130 = vmatpush2.xpose.msra.mxu0 0.0
    %131 = vmatprep.subr.mxu0 0.0
    %132 = vmatpush2.xpose.msra.mxu0 0.0
    %133 = vmatprep.subr.mxu0 0.0
    %134 = vmatpush2.xpose.msra.mxu0 0.0
    %135 = vmatprep.subr.mxu0 0.0
    %136 = vmatpush2.xpose.msra.mxu0 0.0
    %137 = vmatprep.subr.mxu0 0.0
    %138 = vmatpush2.xpose.msra.mxu0 0.0
    %139 = vmatprep.subr.mxu0 0.0
    %140 = vmatpush2.xpose.msra.mxu0 0.0
    %141 = vmatprep.subr.mxu0 0.0
    %142 = vmatpush2.xpose.msra.mxu0 0.0
    %143 = vmatprep.subr.mxu0 0.0
    %144 = vmatpush2.xpose.msra.mxu0 0.0
    %145 = vmatprep.subr.mxu0 0.0
    %146 = vmatpush2.xpose.msra.mxu0 0.0
    %147 = vmatprep.subr.mxu0 0.0
    %148 = vmatpush2.xpose.msra.mxu0 0.0
    %149 = vmatprep.subr.mxu0 0.0
    %150 = vmatpush2.xpose.msra.mxu0 0.0
    %151 = vmatprep.subr.mxu0 0.0
    %152 = vmatpush2.xpose.msra.mxu0 0.0
    %153 = vmatprep.subr.mxu0 0.0
    %154 = vmatpush2.xpose.msra.mxu0 0.0
    %155 = vmatprep.subr.mxu0 0.0
    %156 = vmatpush2.xpose.msra.mxu0 0.0
    %157 = vmatprep.subr.mxu0 0.0
    %158 = vmatpush2.xpose.msra.mxu0 0.0
    %159 = vmatprep.subr.mxu0 0.0
    %160 = vmatpush2.xpose.msra.mxu0 0.0
    %161 = vmatprep.mubr.f32.mxu0 0.0
    %162 = vmatmul.mubr.f32.gmra.mxu0 %v73
    %v163 = vpop.f32.mrf.mxu0
    %v164 = vadd.f32 %v95, %v163
    %v165 = vpop.f32.mrf.mxu0
    %166 = vdwg.mxu0
    %vm167 = vcmp.ge.f32.partialorder %v164, 0.0
    %v168 = vmul.f32 %v164, 0.01
    %v169 = vsel %vm167, %v164, %v168
    %v170 = vld [vmem:[%s5] sm:$0xff]
    %vm171 = vcmp.ge.u32.totalorder %v170, 429496730
    %v172 = vmul.f32 %v169, 1.1111112
    %v173 = vsel %vm171, %v172, 0.0
    %v174 = vrot.slane %v173, 4
    %v175 = vadd.f32 %v173, %v174
    %v176 = vrot.slane %v175, 2
    %v177 = vadd.f32 %v175, %v176
    %v178 = vrot.slane %v177, 1
    %v179 = vadd.f32 %v177, %v178
    %v180 = vrcp.pop 8.0
    %v181 = vmul.f32 %v179, %v180
    %v182 = vmul.f32 %v173, %v173
    %v183 = vrot.slane %v182, 4
    %v184 = vadd.f32 %v182, %v183
    %v185 = vrot.slane %v184, 2
    %v186 = vadd.f32 %v184, %v185
    %v187 = vrot.slane %v186, 1
    %v188 = vadd.f32 %v186, %v187
    %v189 = vmul.f32 %v188, %v180
    %v190 = vmul.f32 %v181, %v181
    %v191 = vsub.f32 %v189, %v190
    %v192 = vmax.f32 %v191, 0.0
    %v193 = vld [vmem:[#allocation7] sm:$0x1]
    %v194 = vadd.f32 %v192, 1e-05
    %v195 = vrsqrt.pop %v194
    %v196 = vmul.f32 %v193, %v195
    %v197 = vld [vmem:[#allocation8] sm:$0x1]
    %v198 = vmul.f32 %v181, %v196
    %v199 = vsub.f32 %v197, %v198
    %v201 = vlaneseq
    %v202 = vshrl.u32 %v201, 7
    %v203 = vsub.s32 0, %v202
    %v204 = vrot.slane %v196, %v203
    %v206 = vmul.f32 %v173, %v204
    %v208 = vlaneseq
    %v209 = vshrl.u32 %v208, 7
    %v210 = vsub.s32 0, %v209
    %v211 = vrot.slane %v199, %v210
    %v213 = vadd.f32 %v206, %v211
    %214 = vst [vmem:[#allocation10] sm:$0xff] %v213
    // Predicated region
    $region42: #{tpu_custom_call.1} parent=1 // pred_check
      _
    $region43: #{tpu_custom_call.1} parent=1 // pred_check_branch
      %216 = sbr.rel (0) target = $region45
    $region44: #{tpu_custom_call.1} parent=1 // pred_region
      %s218 = ssub.s32 128, 128
      %219 = vsyncadd [#allocation4], %s218
      %s221 = sshll.u32 [#allocation10], 4
      %s222 = int_to_ptr.vmem [resolvable:$true] %s221
      %224 = dma.vmem_to_hbm [thread:$0]  %s222, 128, %s6, [#allocation4]
    $region45: #{tpu_custom_call.1} parent=1 // pred_fallthru
      _
    // Predicated region
    $region46: #{tpu_custom_call.1} parent=1 // pred_check
      _
    $region47: #{tpu_custom_call.1} parent=1 // pred_check_branch
      %226 = sbr.rel (0) target = $region49
    $region48: #{tpu_custom_call.1} parent=1 // pred_region
      %227 = dma.done [#allocation4], 128
    $region49: #{tpu_custom_call.1} parent=1 // pred_fallthru
      _
    %228 = vsyncpa [#allocation3], 1
    %229 = vsyncpa [#allocation6], 1
    %230 = vsyncpa [#allocation9], 1
    %231 = vsyncpa [#allocation4], 1

</llo_original>
